<compile_context>
chip_gen: v5e
topology: v5e:2x2
jax: 0.10.0
libtpu: 0.0.40
codegen_flags: <defaults>
</compile_context>

<pallas_src>
import functools

import jax
import jax.numpy as jnp
from jax import lax
from jax.experimental import pallas as pl
from jax.experimental.pallas import tpu as pltpu

IN_DIM = 8
HID_DIM = 32
TIME_INVARIANT = False
EPS = 1e-5  # nn.LayerNorm default eps

# Row indices inside the packed bias/affine blob.
_B1, _G1, _BE1, _B2, _G2, _BE2, _B3 = range(7)

_VMEM = pl.BlockSpec(memory_space=pltpu.MemorySpace.VMEM)
_SMEM = pl.BlockSpec(memory_space=pltpu.MemorySpace.SMEM)


def _layernorm(h, gamma, beta):
    # LayerNorm over the last (feature) axis, biased variance (torch default).
    mean = jnp.mean(h, axis=-1, keepdims=True)
    var = jnp.mean((h - mean) * (h - mean), axis=-1, keepdims=True)
    return (h - mean) * lax.rsqrt(var + EPS) * gamma + beta


def _load_packed(wb_ref, vb_ref):
    """Load the VMEM-resident packed parameters once; returns plain values."""
    w1 = wb_ref[0]                        # (HID, HID): rows [0, IN_DIM) = x part, row IN_DIM = t part
    w1x = w1[:IN_DIM, :]                  # (IN_DIM, HID)
    w1t = w1[IN_DIM:IN_DIM + 1, :]        # (1, HID)   (all-zero if time-invariant)
    w2 = wb_ref[1]                        # (HID, HID)
    w3 = wb_ref[2]                        # (HID, HID), cols >= IN_DIM are zero
    vb = vb_ref[...]                      # (8, HID)
    return (w1x, w1t, w2, w3,
            vb[_B1:_B1 + 1], vb[_G1:_G1 + 1], vb[_BE1:_BE1 + 1],
            vb[_B2:_B2 + 1], vb[_G2:_G2 + 1], vb[_BE2:_BE2 + 1],
            vb[_B3:_B3 + 1])


def _ode_func(x, t, p):
    """f(t, x): the NNODEF MLP. x: (B, IN_DIM); returns (B, HID) with cols >= IN_DIM == 0."""
    (w1x, w1t, w2, w3, b1, g1, be1, b2, g2, be2, b3) = p
    h = jnp.dot(x, w1x, preferred_element_type=jnp.float32) + t * w1t + b1
    h = jnp.tanh(_layernorm(h, g1, be1))
    h = jnp.dot(h, w2, preferred_element_type=jnp.float32) + b2
    h = jnp.tanh(_layernorm(h, g2, be2))
    return jnp.dot(h, w3, preferred_element_type=jnp.float32) + b3


# --------------------------------------------------------------------------- #
# Kernels
# --------------------------------------------------------------------------- #
def _nnodef_fwd_kernel(t_ref, x_ref, wb_ref, vb_ref, out_ref):
    """Single ODE-func evaluation: out = f(t, x)."""
    p = _load_packed(wb_ref, vb_ref)
    out = _ode_func(x_ref[...], t_ref[0], p)        # (B, HID), cols >= IN_DIM are zero
    out_ref[...] = out[:, :IN_DIM]


def _nnodef_euler_kernel(tdt_ref, x0_ref, wb_ref, vb_ref, out_ref, *, n_steps):
    """Fused fixed-step Euler solve: n_steps f-evaluations in one kernel launch."""
    t0 = tdt_ref[0]
    dt = tdt_ref[1]
    p = _load_packed(wb_ref, vb_ref)                # weights loaded once, VMEM-resident

    def body(k, x):
        t = t0 + dt * k.astype(jnp.float32)
        f = _ode_func(x, t, p)                      # (B, HID)
        return x + dt * f[:, :IN_DIM]

    out_ref[...] = lax.fori_loop(0, n_steps, body, x0_ref[...])


# --------------------------------------------------------------------------- #
# Wrappers
# --------------------------------------------------------------------------- #
def _cost(n_evals):
    matmul_flops = 2 * ((IN_DIM + 1) * HID_DIM + HID_DIM * HID_DIM + HID_DIM * IN_DIM)
    bytes_accessed = (3 * HID_DIM * HID_DIM * 4      # wblob
                      + 8 * HID_DIM * 4              # vblob
                      + 2 * IN_DIM * 4 + 8)          # state in/out + t
    return pl.CostEstimate(flops=n_evals * matmul_flops,
                           transcendentals=n_evals * (2 * HID_DIM + 2),
                           bytes_accessed=bytes_accessed)


def nnodef_forward(t, x, packed):
    """out = f(t, x). Matches NNODEF.forward for a (1, IN_DIM) state."""
    wblob, vblob = packed
    t_arr = jnp.reshape(jnp.asarray(t, jnp.float32), (1,))
    return pl.pallas_call(
        _nnodef_fwd_kernel,
        out_shape=jax.ShapeDtypeStruct((x.shape[0], IN_DIM), jnp.float32),
        in_specs=[_SMEM, _VMEM, _VMEM, _VMEM],
        out_specs=_VMEM,
        cost_estimate=_cost(1),
    )(t_arr, x, wblob, vblob)


def nnodef_euler_solve(t0, dt, n_steps, x0, packed):
    """x_{k+1} = x_k + dt * f(t0 + k*dt, x_k), k = 0..n_steps-1, fused in ONE pallas_call."""
    wblob, vblob = packed
    tdt = jnp.stack([jnp.asarray(t0, jnp.float32), jnp.asarray(dt, jnp.float32)])
    kernel = functools.partial(_nnodef_euler_kernel, n_steps=int(n_steps))
    return pl.pallas_call(
        kernel,
        out_shape=jax.ShapeDtypeStruct((x0.shape[0], IN_DIM), jnp.float32),
        in_specs=[_SMEM, _VMEM, _VMEM, _VMEM],
        out_specs=_VMEM,
        cost_estimate=_cost(int(n_steps)),
    )(tdt, x0, wblob, vblob)


# --------------------------------------------------------------------------- #
# Parameters (nn.Linear / nn.LayerNorm shapes), packing, and pure-JAX reference
# --------------------------------------------------------------------------- #
def make_params(key):
    d_in = IN_DIM if TIME_INVARIANT else IN_DIM + 1
    ks = jax.random.split(key, 6)
    w1 = jax.random.normal(ks[0], (d_in, HID_DIM), jnp.float32) * 0.2   # pre-transposed
    b1 = jax.random.normal(ks[1], (HID_DIM,), jnp.float32) * 0.1
    g1 = jnp.ones((HID_DIM,), jnp.float32)
    be1 = jnp.zeros((HID_DIM,), jnp.float32)
    w2 = jax.random.normal(ks[2], (HID_DIM, HID_DIM), jnp.float32) * 0.2
    b2 = jax.random.normal(ks[3], (HID_DIM,), jnp.float32) * 0.1
    g2 = jnp.ones((HID_DIM,), jnp.float32)
    be2 = jnp.zeros((HID_DIM,), jnp.float32)
    w3 = jax.random.normal(ks[4], (HID_DIM, IN_DIM), jnp.float32) * 0.2
    b3 = jax.random.normal(ks[5], (IN_DIM,), jnp.float32) * 0.1
    return (w1, b1, g1, be1, w2, b2, g2, be2, w3, b3)


def pack_params(params):
    """Pack 11 tiny parameter arrays into 2 DMA-friendly blobs (done once per model)."""
    (w1, b1, g1, be1, w2, b2, g2, be2, w3, b3) = params
    d_in = w1.shape[0]
    wblob = jnp.zeros((3, HID_DIM, HID_DIM), jnp.float32)
    wblob = wblob.at[0, :d_in, :].set(w1)
    wblob = wblob.at[1].set(w2)
    wblob = wblob.at[2, :, :IN_DIM].set(w3)
    vblob = jnp.zeros((8, HID_DIM), jnp.float32)
    vblob = vblob.at[_B1].set(b1)
    vblob = vblob.at[_G1].set(g1)
    vblob = vblob.at[_BE1].set(be1)
    vblob = vblob.at[_B2].set(b2)
    vblob = vblob.at[_G2].set(g2)
    vblob = vblob.at[_BE2].set(be2)
    vblob = vblob.at[_B3, :IN_DIM].set(b3)
    return wblob, vblob


def _reference_forward(t, x, params):
    (w1, b1, g1, be1, w2, b2, g2, be2, w3, b3) = params
    if not TIME_INVARIANT:
        x = jnp.concatenate([x, jnp.reshape(t, (1, 1)).astype(x.dtype)], axis=-1)
    h = jnp.tanh(_layernorm(x @ w1 + b1, g1, be1))
    h = jnp.tanh(_layernorm(h @ w2 + b2, g2, be2))
    return h @ w3 + b3


if __name__ == "__main__":
    key = jax.random.PRNGKey(0)
    k_p, k_x, k_t = jax.random.split(key, 3)

    params = make_params(k_p)
    packed = pack_params(params)
    x = jax.random.normal(k_x, (1, IN_DIM), jnp.float32)
    t = jax.random.normal(k_t, (), jnp.float32)

    # 1) Single ODE-func evaluation — exact module forward semantics.
    out = jax.block_until_ready(nnodef_forward(t, x, packed))
    ref = _reference_forward(t, x, params)
    assert out.shape == (1, IN_DIM)
    assert jnp.allclose(out, ref, atol=1e-4, rtol=1e-4), (out, ref)

    # 2) Fused integrator: 16 forward evaluations inside ONE pallas_call.
    n_steps, t0, dt = 16, 0.0, 0.05
    x_final = jax.block_until_ready(nnodef_euler_solve(t0, dt, n_steps, x, packed))
    x_chk = x
    for k in range(n_steps):
        x_chk = x_chk + dt * _reference_forward(jnp.float32(t0 + dt * k), x_chk, params)
    assert x_final.shape == (1, IN_DIM)
    assert jnp.allclose(x_final, x_chk, atol=1e-3, rtol=1e-3), (x_final, x_chk)

    print("KERNEL_OK")
</pallas_src>

<mosaic_0001>
module attributes {stable_mosaic.version = 11 : i64} {
  func.func @_nnodef_fwd_kernel(%arg0: memref<1xf32, #tpu.memory_space<smem>>, %arg1: memref<1x8xf32, #tpu.memory_space<vmem>>, %arg2: memref<3x32x32xf32, #tpu.memory_space<vmem>>, %arg3: memref<8x32xf32, #tpu.memory_space<vmem>>, %arg4: memref<1x8xf32, #tpu.memory_space<vmem>>) attributes {dimension_semantics = [], scalar_prefetch = 0 : i64, scratch_operands = 0 : i64, tpu.core_type = #tpu.core_type<tc>} {
    %c0 = arith.constant 0 : index
    %c0_0 = arith.constant 0 : index
    %c0_1 = arith.constant 0 : index
    %0 = vector.load %arg2[%c0, %c0_0, %c0_1] : memref<3x32x32xf32, #tpu.memory_space<vmem>>, vector<1x32x32xf32>
    %1 = vector.shape_cast %0 : vector<1x32x32xf32> to vector<32x32xf32>
    %2 = vector.extract_strided_slice %1 {offsets = [0, 0], sizes = [8, 32], strides = [1, 1]} : vector<32x32xf32> to vector<8x32xf32>
    %3 = vector.extract_strided_slice %1 {offsets = [8, 0], sizes = [1, 32], strides = [1, 1]} : vector<32x32xf32> to vector<1x32xf32>
    %c1 = arith.constant 1 : index
    %c0_2 = arith.constant 0 : index
    %c0_3 = arith.constant 0 : index
    %4 = vector.load %arg2[%c1, %c0_2, %c0_3] : memref<3x32x32xf32, #tpu.memory_space<vmem>>, vector<1x32x32xf32>
    %5 = vector.shape_cast %4 : vector<1x32x32xf32> to vector<32x32xf32>
    %c2 = arith.constant 2 : index
    %c0_4 = arith.constant 0 : index
    %c0_5 = arith.constant 0 : index
    %6 = vector.load %arg2[%c2, %c0_4, %c0_5] : memref<3x32x32xf32, #tpu.memory_space<vmem>>, vector<1x32x32xf32>
    %7 = vector.shape_cast %6 : vector<1x32x32xf32> to vector<32x32xf32>
    %c0_6 = arith.constant 0 : index
    %c0_7 = arith.constant 0 : index
    %8 = vector.load %arg3[%c0_6, %c0_7] : memref<8x32xf32, #tpu.memory_space<vmem>>, vector<8x32xf32>
    %9 = vector.extract_strided_slice %8 {offsets = [0, 0], sizes = [1, 32], strides = [1, 1]} : vector<8x32xf32> to vector<1x32xf32>
    %10 = vector.extract_strided_slice %8 {offsets = [1, 0], sizes = [1, 32], strides = [1, 1]} : vector<8x32xf32> to vector<1x32xf32>
    %11 = vector.extract_strided_slice %8 {offsets = [2, 0], sizes = [1, 32], strides = [1, 1]} : vector<8x32xf32> to vector<1x32xf32>
    %12 = vector.extract_strided_slice %8 {offsets = [3, 0], sizes = [1, 32], strides = [1, 1]} : vector<8x32xf32> to vector<1x32xf32>
    %13 = vector.extract_strided_slice %8 {offsets = [4, 0], sizes = [1, 32], strides = [1, 1]} : vector<8x32xf32> to vector<1x32xf32>
    %14 = vector.extract_strided_slice %8 {offsets = [5, 0], sizes = [1, 32], strides = [1, 1]} : vector<8x32xf32> to vector<1x32xf32>
    %15 = vector.extract_strided_slice %8 {offsets = [6, 0], sizes = [1, 32], strides = [1, 1]} : vector<8x32xf32> to vector<1x32xf32>
    %c0_8 = arith.constant 0 : index
    %c0_9 = arith.constant 0 : index
    %16 = vector.load %arg1[%c0_8, %c0_9] : memref<1x8xf32, #tpu.memory_space<vmem>>, vector<1x8xf32>
    %c0_10 = arith.constant 0 : index
    %17 = memref.load %arg0[%c0_10] : memref<1xf32, #tpu.memory_space<smem>>
    %cst = arith.constant dense<0.000000e+00> : vector<1x32xf32>
    %18 = tpu.matmul %16, %2, %cst {dimension_numbers = #tpu.dot_dimension_numbers<[1], [0], [0], [1], [0, 0, 1, 1], [], []>} : vector<1x8xf32>, vector<8x32xf32>, vector<1x32xf32> -> vector<1x32xf32>
    %19 = vector.broadcast %17 : f32 to vector<1x32xf32>
    %20 = arith.mulf %19, %3 : vector<1x32xf32>
    %21 = arith.addf %18, %20 : vector<1x32xf32>
    %22 = arith.addf %21, %9 : vector<1x32xf32>
    %cst_11 = arith.constant dense<0.000000e+00> : vector<1xf32>
    %23 = vector.multi_reduction <add>, %22, %cst_11 [1] : vector<1x32xf32> to vector<1xf32>
    %24 = vector.shape_cast %23 : vector<1xf32> to vector<1x1xf32>
    %cst_12 = arith.constant 3.200000e+01 : f32
    %25 = vector.broadcast %cst_12 : f32 to vector<1x1xf32>
    %26 = arith.divf %24, %25 : vector<1x1xf32>
    %27 = vector.broadcast %26 : vector<1x1xf32> to vector<1x32xf32>
    %28 = arith.subf %22, %27 : vector<1x32xf32>
    %29 = vector.broadcast %26 : vector<1x1xf32> to vector<1x32xf32>
    %30 = arith.subf %22, %29 : vector<1x32xf32>
    %31 = arith.mulf %28, %30 : vector<1x32xf32>
    %cst_13 = arith.constant dense<0.000000e+00> : vector<1xf32>
    %32 = vector.multi_reduction <add>, %31, %cst_13 [1] : vector<1x32xf32> to vector<1xf32>
    %33 = vector.shape_cast %32 : vector<1xf32> to vector<1x1xf32>
    %cst_14 = arith.constant 3.200000e+01 : f32
    %34 = vector.broadcast %cst_14 : f32 to vector<1x1xf32>
    %35 = arith.divf %33, %34 : vector<1x1xf32>
    %36 = vector.broadcast %26 : vector<1x1xf32> to vector<1x32xf32>
    %37 = arith.subf %22, %36 : vector<1x32xf32>
    %cst_15 = arith.constant 9.99999974E-6 : f32
    %38 = vector.broadcast %cst_15 : f32 to vector<1x1xf32>
    %39 = arith.addf %35, %38 : vector<1x1xf32>
    %40 = math.rsqrt %39 : vector<1x1xf32>
    %41 = vector.broadcast %40 : vector<1x1xf32> to vector<1x32xf32>
    %42 = arith.mulf %37, %41 : vector<1x32xf32>
    %43 = arith.mulf %42, %10 : vector<1x32xf32>
    %44 = arith.addf %43, %11 : vector<1x32xf32>
    %45 = math.tanh %44 : vector<1x32xf32>
    %cst_16 = arith.constant dense<0.000000e+00> : vector<1x32xf32>
    %46 = tpu.matmul %45, %5, %cst_16 {dimension_numbers = #tpu.dot_dimension_numbers<[1], [0], [0], [1], [0, 0, 1, 1], [], []>} : vector<1x32xf32>, vector<32x32xf32>, vector<1x32xf32> -> vector<1x32xf32>
    %47 = arith.addf %46, %12 : vector<1x32xf32>
    %cst_17 = arith.constant dense<0.000000e+00> : vector<1xf32>
    %48 = vector.multi_reduction <add>, %47, %cst_17 [1] : vector<1x32xf32> to vector<1xf32>
    %49 = vector.shape_cast %48 : vector<1xf32> to vector<1x1xf32>
    %cst_18 = arith.constant 3.200000e+01 : f32
    %50 = vector.broadcast %cst_18 : f32 to vector<1x1xf32>
    %51 = arith.divf %49, %50 : vector<1x1xf32>
    %52 = vector.broadcast %51 : vector<1x1xf32> to vector<1x32xf32>
    %53 = arith.subf %47, %52 : vector<1x32xf32>
    %54 = vector.broadcast %51 : vector<1x1xf32> to vector<1x32xf32>
    %55 = arith.subf %47, %54 : vector<1x32xf32>
    %56 = arith.mulf %53, %55 : vector<1x32xf32>
    %cst_19 = arith.constant dense<0.000000e+00> : vector<1xf32>
    %57 = vector.multi_reduction <add>, %56, %cst_19 [1] : vector<1x32xf32> to vector<1xf32>
    %58 = vector.shape_cast %57 : vector<1xf32> to vector<1x1xf32>
    %cst_20 = arith.constant 3.200000e+01 : f32
    %59 = vector.broadcast %cst_20 : f32 to vector<1x1xf32>
    %60 = arith.divf %58, %59 : vector<1x1xf32>
    %61 = vector.broadcast %51 : vector<1x1xf32> to vector<1x32xf32>
    %62 = arith.subf %47, %61 : vector<1x32xf32>
    %cst_21 = arith.constant 9.99999974E-6 : f32
    %63 = vector.broadcast %cst_21 : f32 to vector<1x1xf32>
    %64 = arith.addf %60, %63 : vector<1x1xf32>
    %65 = math.rsqrt %64 : vector<1x1xf32>
    %66 = vector.broadcast %65 : vector<1x1xf32> to vector<1x32xf32>
    %67 = arith.mulf %62, %66 : vector<1x32xf32>
    %68 = arith.mulf %67, %13 : vector<1x32xf32>
    %69 = arith.addf %68, %14 : vector<1x32xf32>
    %70 = math.tanh %69 : vector<1x32xf32>
    %cst_22 = arith.constant dense<0.000000e+00> : vector<1x32xf32>
    %71 = tpu.matmul %70, %7, %cst_22 {dimension_numbers = #tpu.dot_dimension_numbers<[1], [0], [0], [1], [0, 0, 1, 1], [], []>} : vector<1x32xf32>, vector<32x32xf32>, vector<1x32xf32> -> vector<1x32xf32>
    %72 = arith.addf %71, %15 : vector<1x32xf32>
    %73 = vector.extract_strided_slice %72 {offsets = [0, 0], sizes = [1, 8], strides = [1, 1]} : vector<1x32xf32> to vector<1x8xf32>
    %c0_23 = arith.constant 0 : index
    %c0_24 = arith.constant 0 : index
    %74 = vector.load %arg4[%c0_23, %c0_24] : memref<1x8xf32, #tpu.memory_space<vmem>>, vector<1x8xf32>
    tpu.vector_store %arg4[%c0_23, %c0_24], %73 {strides = array<i32>} : memref<1x8xf32, #tpu.memory_space<vmem>>, vector<1x8xf32>,
    return
  }
}

</mosaic_0001>

<llo_original>
// kernel: tpu_custom_call.1
$region0: #{tpu_custom_call.1}
  #allocation0 [shape = 'u32[]', space=smem, size = 0x4, offset = 0x4, fixed_abs, tag = 'smem constant byte address 0x4 - core index']
  #allocation1 [shape = 'u32[72,128]{1,0:T(1,128)}', space=vmem, size = 0x9000, scoped, tag = 'internal scratch']
  #allocation2 [shape = 'f32[1]{0:T(128)S(6)}', space=smem, size = 0x200, scoped, tag = 'scoped memory for tpu_custom_call.1']
  %s0 = inlined_call_operand.<no memory space> [shape: f32[1], index: 0, kind: input, shape index: {}]
  %s1 = inlined_call_operand.vmem [shape: f32[1,8], index: 1, kind: input, shape index: {}]
  %s2 = inlined_call_operand.hbm [shape: f32[3,32,32], index: 2, kind: input, shape index: {}]
  %s3 = inlined_call_operand.hbm [shape: f32[8,32], index: 3, kind: input, shape index: {}]
  %s4 = inlined_call_operand.hbm [shape: f32[1,8], index: 4, kind: output, shape index: {}]
  %s5 = sld [smem:[#allocation0]]
  $region34: #{tpu_custom_call.1} parent=0
    _
  %s7 = ssub.s32 1, %s5
  %s8 = scalar_select 0, %s7, %s5
  %9 = sst [smem:[#allocation2]] %s0
  $region1: #{tpu_custom_call.1} parent=0
    #allocation3 [shape = 'u8[49152]{0}', space=vmem, size = 0xc000, scoped, tag = 'input window, operand 2, single buffered']
    #allocation4 [shape = 's32[1]{0}', space=sflag, size = 0x4, scoped, tag = 'scoped memory for tpu_custom_call.1']
    #allocation5 [shape = 's32[1]{0}', space=sflag, size = 0x4, scoped, tag = 'scoped memory for tpu_custom_call.1']
    #allocation6 [shape = 'u8[4096]{0}', space=vmem, size = 0x1000, scoped, tag = 'input window, operand 3, single buffered']
    #allocation7 [shape = 's32[1]{0}', space=sflag, size = 0x4, scoped, tag = 'scoped memory for tpu_custom_call.1']
    #allocation8 [shape = 'u8[512]{0}', space=vmem, size = 0x400, scoped, tag = 'output window, operand 0, single buffered']
    %10 = vsyncpa [#allocation4], 0
    %11 = vsyncpa [#allocation7], 0
    %12 = vsyncpa [#allocation5], 0
    // Predicated region
    $region2: #{tpu_custom_call.1} parent=1 // pred_check
      _
    $region3: #{tpu_custom_call.1} parent=1 // pred_check_branch
      %14 = sbr.rel (0) target = $region5
    $region4: #{tpu_custom_call.1} parent=1 // pred_region
      _
    $region5: #{tpu_custom_call.1} parent=1 // pred_fallthru
      _
    // Predicated region
    $region6: #{tpu_custom_call.1} parent=1 // pred_check
      _
    $region7: #{tpu_custom_call.1} parent=1 // pred_check_branch
      %16 = sbr.rel (0) target = $region9
    $region8: #{tpu_custom_call.1} parent=1 // pred_region
      _
    $region9: #{tpu_custom_call.1} parent=1 // pred_fallthru
      _
    // Predicated region
    $region10: #{tpu_custom_call.1} parent=1 // pred_check
      _
    $region11: #{tpu_custom_call.1} parent=1 // pred_check_branch
      %18 = sbr.rel (0) target = $region13
    $region12: #{tpu_custom_call.1} parent=1 // pred_region
      %20 = vsyncadd [#allocation4], 0
      %s21 = sshll.u32 %s2, 4
      %s22 = int_to_ptr.hbm [resolvable:$true] %s21
      %s23 = sshll.u32 [#allocation3], 4
      %s24 = int_to_ptr.vmem [resolvable:$true] %s23
      %29 = dma.hbm_to_vmem [thread:$0]  %s22, 1536, %s24, [#allocation4], 128, 128, 8
    $region13: #{tpu_custom_call.1} parent=1 // pred_fallthru
      _
    // Predicated region
    $region14: #{tpu_custom_call.1} parent=1 // pred_check
      _
    $region15: #{tpu_custom_call.1} parent=1 // pred_check_branch
      %31 = sbr.rel (0) target = $region17
    $region16: #{tpu_custom_call.1} parent=1 // pred_region
      %33 = vsyncadd [#allocation7], 0
      %s35 = sshll.u32 %s3, 4
      %s36 = int_to_ptr.hbm [resolvable:$true] %s35
      %s37 = sshll.u32 [#allocation6], 4
      %s38 = int_to_ptr.vmem [resolvable:$true] %s37
      %40 = dma.hbm_to_vmem [thread:$0]  %s36, 128, %s38, [#allocation7]
    $region17: #{tpu_custom_call.1} parent=1 // pred_fallthru
      _
    // Predicated region
    $region18: #{tpu_custom_call.1} parent=1 // pred_check
      _
    $region19: #{tpu_custom_call.1} parent=1 // pred_check_branch
      %42 = sbr.rel (0) target = $region21
    $region20: #{tpu_custom_call.1} parent=1 // pred_region
      %44 = dma.done [#allocation4], 1536
    $region21: #{tpu_custom_call.1} parent=1 // pred_fallthru
      _
    // Predicated region
    $region22: #{tpu_custom_call.1} parent=1 // pred_check
      _
    $region23: #{tpu_custom_call.1} parent=1 // pred_check_branch
      %46 = sbr.rel (0) target = $region25
    $region24: #{tpu_custom_call.1} parent=1 // pred_region
      %48 = dma.done [#allocation7], 128
    $region25: #{tpu_custom_call.1} parent=1 // pred_fallthru
      _
    %v49 = vld [vmem:[#allocation3] sm:$0xff]
    %v50 = vld [vmem:[#allocation3 + $0x8] sm:$0xff]
    %s51 = scalar_lea.vmem [#allocation3], 32
    %v52 = vld [vmem:[%s51] sm:$0xff]
    %v53 = vld [vmem:[%s51 + $0x8] sm:$0xff]
    %v54 = vld [vmem:[%s51 + $0x10] sm:$0xff]
    %v55 = vld [vmem:[%s51 + $0x18] sm:$0xff]
    %s56 = scalar_lea.vmem [#allocation3], 64
    %v57 = vld [vmem:[%s56] sm:$0xff]
    %v58 = vld [vmem:[%s56 + $0x8] sm:$0xff]
    %v59 = vld [vmem:[%s56 + $0x10] sm:$0xff]
    %v60 = vld [vmem:[%s56 + $0x18] sm:$0xff]
    %v61 = vld [vmem:[#allocation6] sm:$0xff]
    %v62 = vld [vmem:[%s1] sm:$0x1]
    %s63 = sld [smem:[#allocation2]]
    %v64 = vstv %s63
    %v65 = vmul.f32 %v64, %v50
    %vm66 = vcmask 64512
    %v68 = vsel %vm66, %v62, 0
    %70 = vmatpush.msra.mxu0 0.0
    %71 = vmatpush.msra.mxu0 0.0
    %72 = vmatpush.msra.mxu0 0.0
    %73 = vmatpush.msra.mxu0 0.0
    %74 = vmatpush.msra.mxu0 0.0
    %75 = vmatpush.msra.mxu0 0.0
    %76 = vmatpush.msra.mxu0 0.0
    %77 = vmatpush.msra.mxu0 0.0
    %78 = vmatpush.msra.mxu0 0.0
    %79 = vmatpush.msra.mxu0 0.0
    %80 = vmatpush.msra.mxu0 0.0
    %81 = vmatpush.msra.mxu0 0.0
    %82 = vmatpush.msra.mxu0 0.0
    %83 = vmatpush.msra.mxu0 0.0
    %84 = vmatpush.msra.mxu0 0.0
    %85 = vmatpush.msra.mxu0 %v49
    %86 = vmatmul.f32.gmra.mxu0 %v68
    %v87 = vpop.f32.mrf.mxu0
    %v88 = vadd.f32 %v65, %v87
    %89 = vdwg.mxu0
    %v90 = vadd.f32 %v88, %v61
    %vm91 = vcmask 253952
    %v92 = vsel %vm91, %v90, 0.0
    %93 = vadd.xlane.f32.xlu0 %v92
    %v94 = vpop.xlane.xlu0 %93
    %v95 = vrcp.pop 32.0
    %v96 = vmul.f32 32.0, %v95
    %v97 = vsub.f32 1.0, %v96
    %v98 = vmul.f32 %v95, %v97
    %v99 = vadd.f32 %v95, %v98
    %vm100 = vweird.f32 %v95
    %v101 = vsel %vm100, %v95, %v99
    %v102 = vmul.f32 %v94, %v101
    %v103 = vsub.f32 %v90, %v102
    %v104 = vmul.f32 %v103, %v103
    %v105 = vsel %vm91, %v104, 0.0
    %106 = vadd.xlane.f32.xlu0 %v105
    %v107 = vpop.xlane.xlu0 %106
    %v108 = vmul.f32 %v107, %v101
    %v109 = vadd.f32 %v108, 1e-05
    %v110 = vrsqrt.pop %v109
    %v111 = vmul.f32 %v110, %v109
    %v112 = vmul.f32 %v111, %v110
    %v113 = vmul.f32 0.5, %v112
    %v114 = vsub.f32 1.5, %v113
    %v115 = vmul.f32 %v110, %v114
    %vm116 = vweird.f32 %v109
    %vm117 = vweird.f32 %v110
    %vm118 = vmor %vm116, %vm117
    %v119 = vsel %vm118, %v110, %v115
    %v120 = vmul.f32 %v103, %v119
    %v122 = vrot.slane %v61, 1
    %v124 = vmul.f32 %v120, %v122
    %v125 = vrot.slane %v61, 2
    %v127 = vadd.f32 %v124, %v125
    %v128 = vtanh.pop %v127
    %v129 = vrot.slane %v61, 3
    %vm131 = vcmask 261120
    %v133 = vsel %vm131, %v128, 0
    %135 = vmatpush.msra.mxu0 0.0
    %136 = vmatpush.msra.mxu0 0.0
    %137 = vmatpush.msra.mxu0 0.0
    %138 = vmatpush.msra.mxu0 0.0
    %139 = vmatpush.msra.mxu0 0.0
    %140 = vmatpush.msra.mxu0 0.0
    %141 = vmatpush.msra.mxu0 0.0
    %142 = vmatpush.msra.mxu0 0.0
    %143 = vmatpush.msra.mxu0 0.0
    %144 = vmatpush.msra.mxu0 0.0
    %145 = vmatpush.msra.mxu0 0.0
    %146 = vmatpush.msra.mxu0 0.0
    %147 = vmatpush.msra.mxu0 %v55
    %148 = vmatpush.msra.mxu0 %v54
    %149 = vmatpush.msra.mxu0 %v53
    %150 = vmatpush.msra.mxu0 %v52
    %151 = vmatmul.f32.gmra.mxu0 %v133
    %v152 = vpop.f32.mrf.mxu0
    %v153 = vadd.f32 %v129, %v152
    %154 = vdwg.mxu0
    %v155 = vsel %vm91, %v153, 0.0
    %156 = vadd.xlane.f32.xlu0 %v155
    %v157 = vpop.xlane.xlu0 %156
    %v158 = vmul.f32 %v157, %v101
    %v159 = vsub.f32 %v153, %v158
    %v160 = vmul.f32 %v159, %v159
    %v161 = vsel %vm91, %v160, 0.0
    %162 = vadd.xlane.f32.xlu0 %v161
    %v163 = vpop.xlane.xlu0 %162
    %v164 = vmul.f32 %v163, %v101
    %v165 = vadd.f32 %v164, 1e-05
    %v166 = vrsqrt.pop %v165
    %v167 = vmul.f32 %v166, %v165
    %v168 = vmul.f32 %v167, %v166
    %v169 = vmul.f32 0.5, %v168
    %v170 = vsub.f32 1.5, %v169
    %v171 = vmul.f32 %v166, %v170
    %vm172 = vweird.f32 %v165
    %vm173 = vweird.f32 %v166
    %vm174 = vmor %vm172, %vm173
    %v175 = vsel %vm174, %v166, %v171
    %v176 = vmul.f32 %v159, %v175
    %v177 = vrot.slane %v61, 4
    %v179 = vmul.f32 %v176, %v177
    %v180 = vrot.slane %v61, 5
    %v182 = vadd.f32 %v179, %v180
    %v183 = vtanh.pop %v182
    %v184 = vrot.slane %v61, 6
    %v187 = vsel %vm131, %v183, 0
    %189 = vmatpush.msra.mxu0 0.0
    %190 = vmatpush.msra.mxu0 0.0
    %191 = vmatpush.msra.mxu0 0.0
    %192 = vmatpush.msra.mxu0 0.0
    %193 = vmatpush.msra.mxu0 0.0
    %194 = vmatpush.msra.mxu0 0.0
    %195 = vmatpush.msra.mxu0 0.0
    %196 = vmatpush.msra.mxu0 0.0
    %197 = vmatpush.msra.mxu0 0.0
    %198 = vmatpush.msra.mxu0 0.0
    %199 = vmatpush.msra.mxu0 0.0
    %200 = vmatpush.msra.mxu0 0.0
    %201 = vmatpush.msra.mxu0 %v60
    %202 = vmatpush.msra.mxu0 %v59
    %203 = vmatpush.msra.mxu0 %v58
    %204 = vmatpush.msra.mxu0 %v57
    %205 = vmatmul.f32.gmra.mxu0 %v187
    %v206 = vpop.f32.mrf.mxu0
    %v207 = vadd.f32 %v184, %v206
    %208 = vdwg.mxu0
    %vm209 = vcmask 57344
    %210 = vst.msk [vmem:[#allocation8] sm:$0x1] %vm209, %v207
    // Predicated region
    $region26: #{tpu_custom_call.1} parent=1 // pred_check
      _
    $region27: #{tpu_custom_call.1} parent=1 // pred_check_branch
      %212 = sbr.rel (0) target = $region29
    $region28: #{tpu_custom_call.1} parent=1 // pred_region
      %214 = vsyncadd [#allocation5], 0
      %s216 = sshll.u32 [#allocation8], 4
      %s217 = int_to_ptr.vmem [resolvable:$true] %s216
      %s218 = sshll.u32 %s4, 4
      %s219 = int_to_ptr.hbm [resolvable:$true] %s218
      %221 = dma.vmem_to_hbm [thread:$0]  %s217, 16, %s219, [#allocation5]
    $region29: #{tpu_custom_call.1} parent=1 // pred_fallthru
      _
    // Predicated region
    $region30: #{tpu_custom_call.1} parent=1 // pred_check
      _
    $region31: #{tpu_custom_call.1} parent=1 // pred_check_branch
      %223 = sbr.rel (0) target = $region33
    $region32: #{tpu_custom_call.1} parent=1 // pred_region
      %225 = dma.done [#allocation5], 16
    $region33: #{tpu_custom_call.1} parent=1 // pred_fallthru
      _
    %226 = vsyncpa [#allocation4], 1
    %227 = vsyncpa [#allocation7], 1
    %228 = vsyncpa [#allocation5], 1

</llo_original>
